<compile_context>
chip_gen: v7x
topology: tpu7x:2x2x1
jax: 0.10.0
libtpu: 0.0.40
codegen_flags: <defaults>
</compile_context>

<pallas_src>
import functools
import math

import jax
import jax.numpy as jnp
from jax.experimental import pallas as pl
from jax.experimental.pallas import tpu as pltpu

_MIB = 1024 * 1024


# ------------------------------------------------------------------ sizing utilities
def _round_up(v, m):
    return ((v + m - 1) // m) * m


def _sublane(itemsize):
    # Sublane packing granularity: 8 (32-bit), 16 (16-bit), 32 (8-bit).
    return max(8, 32 // itemsize)


@functools.lru_cache(maxsize=None)
def _hw_params():
    """Generation-aware budgets (target block bytes, scoped-VMEM limit, input buffers)."""
    vmem_cap = None
    try:
        info = pltpu.get_tpu_info()
        vmem_cap = int(getattr(info, "vmem_capacity_bytes", 0)) or None
    except Exception:
        vmem_cap = None
    if vmem_cap is not None and vmem_cap >= 96 * _MIB:
        # v5e / v6e (128 MiB VMEM): bigger blocks amortize the ~0.35 us/step overhead;
        # 64 MiB scoped limit leaves in+out double buffers + relayout temp comfortable
        # (also > v5e's 16 MiB default so double-buffering always survives).
        return {"target_block_bytes": 8 * _MIB, "vmem_limit_bytes": 64 * _MIB,
                "input_buffers": 2}
    if vmem_cap is not None:
        # v7x-class (64 MiB physical VMEM): 4 MiB blocks, tighter scoped limit, and a
        # third input buffer so the ~3.2 TB/s fetch latency stays hidden.
        return {"target_block_bytes": 4 * _MIB, "vmem_limit_bytes": 40 * _MIB,
                "input_buffers": 3}
    # Unknown hardware: conservative budget, default double buffering.
    return {"target_block_bytes": 4 * _MIB, "vmem_limit_bytes": 40 * _MIB,
            "input_buffers": 2}


def _compiler_params(n_grid_axes, hw):
    return pltpu.CompilerParams(
        dimension_semantics=("parallel",) * n_grid_axes,
        vmem_limit_bytes=hw["vmem_limit_bytes"],
    )


def _cap128(d, limit):
    """Largest valid tile for a dim of extent d not exceeding `limit`:
    the full dim if it fits, otherwise the largest multiple of 128 <= limit."""
    if d <= limit:
        return d
    return max(128, (limit // 128) * 128)


def _pair_tiles(da, db, itemsize, target_bytes, transposed_out):
    """Pick a (ta, tb) tile for a (da, db) kernel view.

    Each tile dim is either the full dim or a multiple of 128 (lane-dense loads AND
    stores). Sizing uses *padded* VMEM bytes of the (ta, tb) view and -- when the
    kernel transposes -- of the (tb, ta) output view, so narrow dims / narrow dtypes
    can neither starve a grid step nor blow up the working set. Rectangular tiles are
    allowed (e.g. 2048x1024 bf16, 2048x2048 int8) instead of a square side cap.
    """
    sub = _sublane(itemsize)
    start_cap = 4096

    def padded_bytes(ta, tb):
        p = _round_up(ta, sub) * _round_up(tb, 128)
        if transposed_out:
            p = max(p, _round_up(tb, sub) * _round_up(ta, 128))
        return p * itemsize

    def shrink(t):
        return max(128, ((t // 2) // 128) * 128)

    ta = _cap128(da, start_cap)
    tb = _cap128(db, start_cap)
    while padded_bytes(ta, tb) > target_bytes and (ta > 128 or tb > 128):
        if ta >= tb and ta > 128:
            ta = shrink(ta)
        else:
            tb = shrink(tb)
    return ta, tb


# --------------------------------------------------------------------------- kernels
def _transpose_kernel(x_ref, o_ref):
    # (..., A, B) block -> (..., B, A) block (batched minor-dims transpose in VMEM).
    o_ref[...] = jnp.swapaxes(x_ref[...], -1, -2)


def _identity_kernel(x_ref, o_ref):
    o_ref[...] = x_ref[...]


# ------------------------------------------------------------------- last-two swap
def _transpose_last_two(x, hw):
    """Swap the last two axes of x (x.ndim >= 2)."""
    orig_shape = x.shape
    H, W = orig_shape[-2], orig_shape[-1]
    lead = orig_shape[:-2]
    b_flat = math.prod(lead) if lead else 1
    x3 = x.reshape(b_flat, H, W)

    itemsize = jnp.dtype(x.dtype).itemsize
    target = hw["target_block_bytes"]
    sub = _sublane(itemsize)
    # Budget on padded VMEM bytes of BOTH orientations ((H,W) in, (W,H) out).
    pad_in = _round_up(H, sub) * _round_up(W, 128) * itemsize
    pad_out = _round_up(W, sub) * _round_up(H, 128) * itemsize
    padded_plane_bytes = max(pad_in, pad_out)

    if padded_plane_bytes <= target:
        # Small planes: batch whole (H, W) matrices per block (full last-two dims ->
        # (8,128) rule satisfied for any H, W).
        # TODO(synk): for sub-(8,128) planes verify via bundle dump that DMA (not masked
        # vst/relayout) still dominates; fall back to an XLA copy-transpose if not.
        tb = max(1, min(b_flat, target // padded_plane_bytes))
        # Keep a multi-step grid whenever there is enough data: lets the "parallel"
        # axis split across v7x's two TensorCores and keeps prefetch/writeback
        # overlapped with compute on all generations.
        total_bytes = b_flat * padded_plane_bytes
        if total_bytes > 2 * target:
            tb = min(tb, max(1, math.ceil(b_flat / 8)))
        grid = (pl.cdiv(b_flat, tb),)
        # Non-divisible b_flat: the padded final input block reads out-of-bounds
        # garbage that only maps to dropped (bounds-masked) output rows -> correct.
        in_specs = [pl.BlockSpec((tb, H, W), lambda b: (b, 0, 0))]
        out_specs = pl.BlockSpec((tb, W, H), lambda b: (b, 0, 0))
    else:
        # Large planes: rectangular 128-aligned tiles -> lane-dense loads and stores,
        # shape-independent VMEM; ragged edges handled by pl.cdiv + masked DMA.
        th, tw = _pair_tiles(H, W, itemsize, target, transposed_out=True)
        grid = (b_flat, pl.cdiv(H, th), pl.cdiv(W, tw))

        def _make_in_spec():
            imap = lambda b, i, j: (b, i, j)
            if hw["input_buffers"] > 2 and hasattr(pl, "Buffered"):
                try:
                    # v7x: 3-deep input buffering keeps the body from waiting on a fetch.
                    return pl.BlockSpec((1, th, tw), imap,
                                        pipeline_mode=pl.Buffered(hw["input_buffers"]))
                except TypeError:
                    pass
            return pl.BlockSpec((1, th, tw), imap)

        in_specs = [_make_in_spec()]
        out_specs = pl.BlockSpec((1, tw, th), lambda b, i, j: (b, j, i))

    out3 = pl.pallas_call(
        _transpose_kernel,
        out_shape=jax.ShapeDtypeStruct((b_flat, W, H), x.dtype),
        grid_spec=pltpu.PrefetchScalarGridSpec(
            num_scalar_prefetch=0,
            grid=grid,
            in_specs=in_specs,
            out_specs=out_specs,
        ),
        compiler_params=_compiler_params(len(grid), hw),
    )(x3)
    return out3.reshape(*lead, W, H)


# --------------------------------------------------------------- both axes leading
def _transpose_leading_dims(x, d0, d1, hw):
    """Swap two axes that both lie strictly before the last two dims.

    Identity kernel body; the swap lives entirely in the output index map. For small
    trailing planes, unchanged leading dims are folded into the block so each grid
    step moves ~target bytes; for large planes the (H, W) plane is tiled so the VMEM
    working set stays bounded (fits v7x's 64 MiB).
    """
    nd = x.ndim
    s = x.shape
    itemsize = jnp.dtype(x.dtype).itemsize
    target = hw["target_block_bytes"]
    sub = _sublane(itemsize)
    H, W = s[-2], s[-1]
    padded_plane_bytes = _round_up(H, sub) * _round_up(W, 128) * itemsize

    block = [1] * nd
    if padded_plane_bytes <= target:
        block[-2], block[-1] = H, W
        blk_bytes = padded_plane_bytes
        # Fold unchanged leading dims (innermost first) up to the byte budget.
        for k in range(nd - 3, -1, -1):
            if k in (d0, d1) or blk_bytes >= target:
                continue
            f = min(s[k], max(1, target // blk_bytes))
            if f > 1:
                block[k] = int(f)
                blk_bytes *= f
    else:
        th, tw = _pair_tiles(H, W, itemsize, target, transposed_out=False)
        block[-2], block[-1] = th, tw

    out_shape = list(s)
    out_shape[d0], out_shape[d1] = out_shape[d1], out_shape[d0]

    grid = tuple(pl.cdiv(s[k], block[k]) for k in range(nd))

    def in_map(*idx):
        return idx

    def out_map(*idx):
        idx = list(idx)
        idx[d0], idx[d1] = idx[d1], idx[d0]
        return tuple(idx)

    return pl.pallas_call(
        _identity_kernel,
        out_shape=jax.ShapeDtypeStruct(tuple(out_shape), x.dtype),
        grid_spec=pltpu.PrefetchScalarGridSpec(
            num_scalar_prefetch=0,
            grid=grid,
            in_specs=[pl.BlockSpec(tuple(block), in_map)],
            out_specs=pl.BlockSpec(tuple(block), out_map),
        ),
        compiler_params=_compiler_params(len(grid), hw),
    )(x)


# ------------------------------------------------------- mixed case (fused, 1 pass)
def _transpose_mixed(x, d0, d1, hw):
    """One swapped axis among the last two (d1), the other leading (d0 < nd-2).

    Single fused pallas_call: the leading-axis reordering is pure index-map
    bookkeeping; the kernel view is a 2-D (TA, TW) tile (plus folded batch dims
    before d0) that is transposed in VMEM when the lane axis moves (d1 == nd-1) or
    copied verbatim when only the sublane axis moves (d1 == nd-2). This does one HBM
    read + one HBM write (the minimum) instead of the old pre-transpose + kernel.
    """
    nd = x.ndim
    s = x.shape
    itemsize = jnp.dtype(x.dtype).itemsize
    sub = _sublane(itemsize)
    target = hw["target_block_bytes"]
    lane_swapped = (d1 == nd - 1)

    A, W = s[d0], s[nd - 1]
    ta, tw = _pair_tiles(A, W, itemsize, target, transposed_out=lane_swapped)

    # Block layout: kernel view = (batch folds..., TA, TW); every other dim is a
    # size-1 squeezed grid axis whose output position is pure index-map bookkeeping.
    in_block = [None] * nd
    in_block[d0] = ta
    in_block[nd - 1] = tw

    blk = _round_up(ta, sub) * _round_up(tw, 128) * itemsize
    if lane_swapped:
        blk = max(blk, _round_up(tw, sub) * _round_up(ta, 128) * itemsize)
    # Fold unchanged dims strictly before d0 (innermost first) as batch dims of the
    # kernel view so small (A, W) pairs still move ~target bytes per grid step.
    for k in range(d0 - 1, -1, -1):
        if blk >= target:
            break
        f = min(s[k], max(1, target // blk))
        if f > 1:
            in_block[k] = int(f)
            blk *= f

    out_block = list(in_block)
    out_block[d0], out_block[d1] = out_block[d1], out_block[d0]

    out_shape = list(s)
    out_shape[d0], out_shape[d1] = out_shape[d1], out_shape[d0]

    grid = tuple(pl.cdiv(s[k], in_block[k] or 1) for k in range(nd))

    def in_map(*idx):
        return idx

    def out_map(*idx):
        idx = list(idx)
        idx[d0], idx[d1] = idx[d1], idx[d0]
        return tuple(idx)

    kernel = _transpose_kernel if lane_swapped else _identity_kernel
    return pl.pallas_call(
        kernel,
        out_shape=jax.ShapeDtypeStruct(tuple(out_shape), x.dtype),
        grid_spec=pltpu.PrefetchScalarGridSpec(
            num_scalar_prefetch=0,
            grid=grid,
            in_specs=[pl.BlockSpec(tuple(in_block), in_map)],
            out_specs=pl.BlockSpec(tuple(out_block), out_map),
        ),
        compiler_params=_compiler_params(len(grid), hw),
    )(x)


# ---------------------------------------------------------------------- entry point
def transpose_pallas(x, dim0=-1, dim1=-2):
    """Equivalent of torch.Tensor.transpose(dim0, dim1)."""
    nd = x.ndim
    d0 = dim0 % nd
    d1 = dim1 % nd
    if d0 == d1:
        return x
    d0, d1 = min(d0, d1), max(d0, d1)
    hw = _hw_params()

    # Hot path: the adjacent last pair (module default).
    if (d0, d1) == (nd - 2, nd - 1):
        return _transpose_last_two(x, hw)

    # Both swapped axes strictly before the last two dims -> pure index-map swap.
    if d1 < nd - 2:
        return _transpose_leading_dims(x, d0, d1, hw)

    # Mixed case: one swapped axis among the last two, the other leading.
    try:
        # Fused single pass (minimal HBM traffic).
        return _transpose_mixed(x, d0, d1, hw)
    except Exception:
        # Safety net if the compiler rejects the single-row sublane blocks: one XLA
        # pre-transpose brings the pair adjacent so the last-two kernel lands directly
        # on the target permutation (costs one extra HBM pass; result identical).
        p = list(range(nd))
        p[d0], p[d1] = p[d1], p[d0]
        fwd = p[:-2] + [p[-1], p[-2]]
        return _transpose_last_two(jnp.transpose(x, fwd), hw)


if __name__ == "__main__":
    key = jax.random.PRNGKey(0)
    x = jax.random.normal(key, (2, 4, 16, 16), dtype=jnp.float32)

    def check(out, ref, name):
        assert out.shape == ref.shape, (name, out.shape, ref.shape)
        assert bool(jnp.array_equal(out, ref)), f"mismatch vs reference: {name}"

    # 1) Default Transpose(): swap last two dims (batched small-plane path).
    check(jax.block_until_ready(transpose_pallas(x)), jnp.swapaxes(x, -1, -2), "default")

    # 2) Lane axis <-> leading axis (dims 1,3): fused mixed path (in-VMEM 2D transpose).
    check(jax.block_until_ready(transpose_pallas(x, 1, 3)), jnp.swapaxes(x, 1, 3), "dims(1,3)")

    # 3) Sublane axis <-> leading axis (dims 1,2): fused mixed path (identity copy).
    check(jax.block_until_ready(transpose_pallas(x, 1, 2)), jnp.swapaxes(x, 1, 2), "dims(1,2)")

    # 4) Both swapped axes before the last two (dims 0,1): pure index-map path.
    check(jax.block_until_ready(transpose_pallas(x, 0, 1)), jnp.swapaxes(x, 0, 1), "dims(0,1)")

    # 5) Large-plane tiled path, 128-aligned dims.
    key, k5 = jax.random.split(key)
    y = jax.random.normal(k5, (1, 2304, 1280), dtype=jnp.float32)
    check(jax.block_until_ready(transpose_pallas(y)), jnp.swapaxes(y, -1, -2), "tiled aligned")

    # 6) Large-plane tiled path with ragged edge tiles.
    key, k6 = jax.random.split(key)
    z = jax.random.normal(k6, (1, 2200, 1300), dtype=jnp.float32)
    check(jax.block_until_ready(transpose_pallas(z)), jnp.swapaxes(z, -1, -2), "tiled ragged")

    # 7) Narrow dtype (bf16) large plane: rectangular dtype-aware tiles.
    key, k7 = jax.random.split(key)
    w = jax.random.normal(k7, (1, 2560, 2176), dtype=jnp.bfloat16)
    check(jax.block_until_ready(transpose_pallas(w)), jnp.swapaxes(w, -1, -2), "tiled bf16")

    # 8) 5-D mixed case with a folded leading batch dim (dims 1,4).
    key, k8 = jax.random.split(key)
    v = jax.random.normal(k8, (2, 3, 4, 16, 16), dtype=jnp.float32)
    check(jax.block_until_ready(transpose_pallas(v, 1, 4)), jnp.swapaxes(v, 1, 4), "5d dims(1,4)")

    # 9) 5-D leading-dims swap with a folded unchanged middle dim (dims 0,2).
    check(jax.block_until_ready(transpose_pallas(v, 0, 2)), jnp.swapaxes(v, 0, 2), "5d dims(0,2)")

    print("KERNEL_OK")
</pallas_src>

<mosaic_0001>
module attributes {stable_mosaic.version = 11 : i64} {
  func.func @_transpose_kernel(%arg0: i32, %arg1: memref<8x16x16xf32, #tpu.memory_space<vmem>>, %arg2: memref<8x16x16xf32, #tpu.memory_space<vmem>>) attributes {dimension_semantics = [#tpu.dimension_semantics<parallel>], iteration_bounds = array<i64: 1>, scalar_prefetch = 0 : i64, scratch_operands = 0 : i64, tpu.core_type = #tpu.core_type<tc>, window_params = [{transform_indices = @transform_0, window_bounds = array<i64: 8, 16, 16>}, {transform_indices = @transform_1, window_bounds = array<i64: 8, 16, 16>}]} {
    %c0 = arith.constant 0 : index
    %c0_0 = arith.constant 0 : index
    %c0_1 = arith.constant 0 : index
    %0 = vector.load %arg1[%c0, %c0_0, %c0_1] : memref<8x16x16xf32, #tpu.memory_space<vmem>>, vector<8x16x16xf32>
    %1 = tpu.transpose %0, [0, 2, 1] : vector<8x16x16xf32> -> vector<8x16x16xf32>
    %c0_2 = arith.constant 0 : index
    %c0_3 = arith.constant 0 : index
    %c0_4 = arith.constant 0 : index
    %2 = vector.load %arg2[%c0_2, %c0_3, %c0_4] : memref<8x16x16xf32, #tpu.memory_space<vmem>>, vector<8x16x16xf32>
    tpu.vector_store %arg2[%c0_2, %c0_3, %c0_4], %1 {strides = array<i32>} : memref<8x16x16xf32, #tpu.memory_space<vmem>>, vector<8x16x16xf32>,
    return
  }
  func.func @transform_0(%arg0: i32) -> (i32, i32, i32) {
    %c0_i32 = arith.constant 0 : i32
    %c0_i32_0 = arith.constant 0 : i32
    %c0_i32_1 = arith.constant 0 : i32
    return %arg0, %c0_i32, %c0_i32_0 : i32, i32, i32
  }
  func.func @transform_1(%arg0: i32) -> (i32, i32, i32) {
    %c0_i32 = arith.constant 0 : i32
    %c0_i32_0 = arith.constant 0 : i32
    %c0_i32_1 = arith.constant 0 : i32
    return %arg0, %c0_i32, %c0_i32_0 : i32, i32, i32
  }
}

</mosaic_0001>

<llo_original>
// kernel: tpu_custom_call.1
$region0: #{tpu_custom_call.1}
  #allocation0 [shape = 'u32[]', space=smem, size = 0x4, offset = 0x4, fixed_abs, tag = 'smem constant byte address 0x4 - core index']
  #allocation1 [shape = 'u32[144,128]{1,0:T(1,128)}', space=vmem, size = 0x12000, scoped, tag = 'internal scratch']
  %s0 = inlined_call_operand.hbm [shape: f32[8,16,16], index: 0, kind: input, shape index: {}]
  %s1 = inlined_call_operand.hbm [shape: f32[8,16,16], index: 1, kind: output, shape index: {}]
  %s2 = sld [smem:[#allocation0]]
  $region18: #{tpu_custom_call.1} parent=0
    _
  %s4 = ssub.s32 1, %s2
  %s5 = scalar_select 0, %s4, %s2
  $region1: #{tpu_custom_call.1} parent=0
    #allocation2 [shape = 'u8[65536]{0}', space=vmem, size = 0x10000, scoped, tag = 'input window, operand 0, single buffered']
    #allocation3 [shape = 's32[1]{0}', space=sflag, size = 0x4, scoped, tag = 'scoped memory for tpu_custom_call.1']
    #allocation4 [shape = 's32[1]{0}', space=sflag, size = 0x4, scoped, tag = 'scoped memory for tpu_custom_call.1']
    #allocation5 [shape = 'u8[65536]{0}', space=vmem, size = 0x10000, scoped, tag = 'output window, operand 0, single buffered']
    %6 = vsyncpa [#allocation3], 0
    %7 = vsyncpa [#allocation4], 0
    // Predicated region
    $region2: #{tpu_custom_call.1} parent=1 // pred_check
      _
    $region3: #{tpu_custom_call.1} parent=1 // pred_check_branch
      %9 = sbr.rel (0) target = $region5
    $region4: #{tpu_custom_call.1} parent=1 // pred_region
      %s11 = ssub.s32 2048, 2048
      %12 = vsyncadd [#allocation3], %s11
      %s13 = sshll.u32 [#allocation2], 4
      %s14 = int_to_ptr.vmem [resolvable:$true] %s13
      %19 = dma.hbm_to_vmem [thread:$0]  %s0, 2048, %s14, [#allocation3], 128, 128, 8
    $region5: #{tpu_custom_call.1} parent=1 // pred_fallthru
      _
    // Predicated region
    $region6: #{tpu_custom_call.1} parent=1 // pred_check
      _
    $region7: #{tpu_custom_call.1} parent=1 // pred_check_branch
      %21 = sbr.rel (0) target = $region9
    $region8: #{tpu_custom_call.1} parent=1 // pred_region
      %22 = dma.done [#allocation3], 2048
    $region9: #{tpu_custom_call.1} parent=1 // pred_fallthru
      _
    %v23 = vld [vmem:[#allocation2] sm:$0xff]
    %v24 = vld [vmem:[#allocation2 + $0x8] sm:$0xff]
    %v25 = vld [vmem:[#allocation2 + $0x10] sm:$0xff]
    %v26 = vld [vmem:[#allocation2 + $0x18] sm:$0xff]
    %v27 = vld [vmem:[#allocation2 + $0x20] sm:$0xff]
    %v28 = vld [vmem:[#allocation2 + $0x28] sm:$0xff]
    %v29 = vld [vmem:[#allocation2 + $0x30] sm:$0xff]
    %v30 = vld [vmem:[#allocation2 + $0x38] sm:$0xff]
    %v31 = vld [vmem:[#allocation2 + $0x40] sm:$0xff]
    %v32 = vld [vmem:[#allocation2 + $0x48] sm:$0xff]
    %v33 = vld [vmem:[#allocation2 + $0x50] sm:$0xff]
    %v34 = vld [vmem:[#allocation2 + $0x58] sm:$0xff]
    %v35 = vld [vmem:[#allocation2 + $0x60] sm:$0xff]
    %v36 = vld [vmem:[#allocation2 + $0x68] sm:$0xff]
    %v37 = vld [vmem:[#allocation2 + $0x70] sm:$0xff]
    %v38 = vld [vmem:[#allocation2 + $0x78] sm:$0xff]
    %39 = vxpose.xlu0.b32.start [1/16] %v23, 128
    %40 = vxpose.xlu0.b32.cont [2/16] %v24, 128
    %41 = vxpose.xlu0.b32.cont [3/16] 0.0, 128
    %42 = vxpose.xlu0.b32.cont [4/16] 0.0, 128
    %43 = vxpose.xlu0.b32.cont [5/16] 0.0, 128
    %44 = vxpose.xlu0.b32.cont [6/16] 0.0, 128
    %45 = vxpose.xlu0.b32.cont [7/16] 0.0, 128
    %46 = vxpose.xlu0.b32.cont [8/16] 0.0, 128
    %47 = vxpose.xlu0.b32.cont [9/16] 0.0, 128
    %48 = vxpose.xlu0.b32.cont [10/16] 0.0, 128
    %49 = vxpose.xlu0.b32.cont [11/16] 0.0, 128
    %50 = vxpose.xlu0.b32.cont [12/16] 0.0, 128
    %51 = vxpose.xlu0.b32.cont [13/16] 0.0, 128
    %52 = vxpose.xlu0.b32.cont [14/16] 0.0, 128
    %53 = vxpose.xlu0.b32.cont [15/16] 0.0, 128
    %54 = vxpose.xlu0.b32.end [16/16] 0.0, 128
    %v55 = vpop.trf.xlu0
    %v56 = vpop.trf.xlu0
    %v57 = vpop.trf.xlu0
    %v58 = vpop.trf.xlu0
    %v59 = vpop.trf.xlu0
    %v60 = vpop.trf.xlu0
    %v61 = vpop.trf.xlu0
    %v62 = vpop.trf.xlu0
    %v63 = vpop.trf.xlu0
    %v64 = vpop.trf.xlu0
    %v65 = vpop.trf.xlu0
    %v66 = vpop.trf.xlu0
    %v67 = vpop.trf.xlu0
    %v68 = vpop.trf.xlu0
    %v69 = vpop.trf.xlu0
    %v70 = vpop.trf.xlu0
    %71 = vxpose.xlu0.b32.start [1/16] %v25, 128
    %72 = vxpose.xlu0.b32.cont [2/16] %v26, 128
    %73 = vxpose.xlu0.b32.cont [3/16] 0.0, 128
    %74 = vxpose.xlu0.b32.cont [4/16] 0.0, 128
    %75 = vxpose.xlu0.b32.cont [5/16] 0.0, 128
    %76 = vxpose.xlu0.b32.cont [6/16] 0.0, 128
    %77 = vxpose.xlu0.b32.cont [7/16] 0.0, 128
    %78 = vxpose.xlu0.b32.cont [8/16] 0.0, 128
    %79 = vxpose.xlu0.b32.cont [9/16] 0.0, 128
    %80 = vxpose.xlu0.b32.cont [10/16] 0.0, 128
    %81 = vxpose.xlu0.b32.cont [11/16] 0.0, 128
    %82 = vxpose.xlu0.b32.cont [12/16] 0.0, 128
    %83 = vxpose.xlu0.b32.cont [13/16] 0.0, 128
    %84 = vxpose.xlu0.b32.cont [14/16] 0.0, 128
    %85 = vxpose.xlu0.b32.cont [15/16] 0.0, 128
    %86 = vxpose.xlu0.b32.end [16/16] 0.0, 128
    %v87 = vpop.trf.xlu0
    %v88 = vpop.trf.xlu0
    %v89 = vpop.trf.xlu0
    %v90 = vpop.trf.xlu0
    %v91 = vpop.trf.xlu0
    %v92 = vpop.trf.xlu0
    %v93 = vpop.trf.xlu0
    %v94 = vpop.trf.xlu0
    %v95 = vpop.trf.xlu0
    %v96 = vpop.trf.xlu0
    %v97 = vpop.trf.xlu0
    %v98 = vpop.trf.xlu0
    %v99 = vpop.trf.xlu0
    %v100 = vpop.trf.xlu0
    %v101 = vpop.trf.xlu0
    %v102 = vpop.trf.xlu0
    %103 = vxpose.xlu0.b32.start [1/16] %v27, 128
    %104 = vxpose.xlu0.b32.cont [2/16] %v28, 128
    %105 = vxpose.xlu0.b32.cont [3/16] 0.0, 128
    %106 = vxpose.xlu0.b32.cont [4/16] 0.0, 128
    %107 = vxpose.xlu0.b32.cont [5/16] 0.0, 128
    %108 = vxpose.xlu0.b32.cont [6/16] 0.0, 128
    %109 = vxpose.xlu0.b32.cont [7/16] 0.0, 128
    %110 = vxpose.xlu0.b32.cont [8/16] 0.0, 128
    %111 = vxpose.xlu0.b32.cont [9/16] 0.0, 128
    %112 = vxpose.xlu0.b32.cont [10/16] 0.0, 128
    %113 = vxpose.xlu0.b32.cont [11/16] 0.0, 128
    %114 = vxpose.xlu0.b32.cont [12/16] 0.0, 128
    %115 = vxpose.xlu0.b32.cont [13/16] 0.0, 128
    %116 = vxpose.xlu0.b32.cont [14/16] 0.0, 128
    %117 = vxpose.xlu0.b32.cont [15/16] 0.0, 128
    %118 = vxpose.xlu0.b32.end [16/16] 0.0, 128
    %v119 = vpop.trf.xlu0
    %v120 = vpop.trf.xlu0
    %v121 = vpop.trf.xlu0
    %v122 = vpop.trf.xlu0
    %v123 = vpop.trf.xlu0
    %v124 = vpop.trf.xlu0
    %v125 = vpop.trf.xlu0
    %v126 = vpop.trf.xlu0
    %v127 = vpop.trf.xlu0
    %v128 = vpop.trf.xlu0
    %v129 = vpop.trf.xlu0
    %v130 = vpop.trf.xlu0
    %v131 = vpop.trf.xlu0
    %v132 = vpop.trf.xlu0
    %v133 = vpop.trf.xlu0
    %v134 = vpop.trf.xlu0
    %135 = vxpose.xlu0.b32.start [1/16] %v29, 128
    %136 = vxpose.xlu0.b32.cont [2/16] %v30, 128
    %137 = vxpose.xlu0.b32.cont [3/16] 0.0, 128
    %138 = vxpose.xlu0.b32.cont [4/16] 0.0, 128
    %139 = vxpose.xlu0.b32.cont [5/16] 0.0, 128
    %140 = vxpose.xlu0.b32.cont [6/16] 0.0, 128
    %141 = vxpose.xlu0.b32.cont [7/16] 0.0, 128
    %142 = vxpose.xlu0.b32.cont [8/16] 0.0, 128
    %143 = vxpose.xlu0.b32.cont [9/16] 0.0, 128
    %144 = vxpose.xlu0.b32.cont [10/16] 0.0, 128
    %145 = vxpose.xlu0.b32.cont [11/16] 0.0, 128
    %146 = vxpose.xlu0.b32.cont [12/16] 0.0, 128
    %147 = vxpose.xlu0.b32.cont [13/16] 0.0, 128
    %148 = vxpose.xlu0.b32.cont [14/16] 0.0, 128
    %149 = vxpose.xlu0.b32.cont [15/16] 0.0, 128
    %150 = vxpose.xlu0.b32.end [16/16] 0.0, 128
    %v151 = vpop.trf.xlu0
    %v152 = vpop.trf.xlu0
    %v153 = vpop.trf.xlu0
    %v154 = vpop.trf.xlu0
    %v155 = vpop.trf.xlu0
    %v156 = vpop.trf.xlu0
    %v157 = vpop.trf.xlu0
    %v158 = vpop.trf.xlu0
    %v159 = vpop.trf.xlu0
    %v160 = vpop.trf.xlu0
    %v161 = vpop.trf.xlu0
    %v162 = vpop.trf.xlu0
    %v163 = vpop.trf.xlu0
    %v164 = vpop.trf.xlu0
    %v165 = vpop.trf.xlu0
    %v166 = vpop.trf.xlu0
    %167 = vxpose.xlu0.b32.start [1/16] %v31, 128
    %168 = vxpose.xlu0.b32.cont [2/16] %v32, 128
    %169 = vxpose.xlu0.b32.cont [3/16] 0.0, 128
    %170 = vxpose.xlu0.b32.cont [4/16] 0.0, 128
    %171 = vxpose.xlu0.b32.cont [5/16] 0.0, 128
    %172 = vxpose.xlu0.b32.cont [6/16] 0.0, 128
    %173 = vxpose.xlu0.b32.cont [7/16] 0.0, 128
    %174 = vxpose.xlu0.b32.cont [8/16] 0.0, 128
    %175 = vxpose.xlu0.b32.cont [9/16] 0.0, 128
    %176 = vxpose.xlu0.b32.cont [10/16] 0.0, 128
    %177 = vxpose.xlu0.b32.cont [11/16] 0.0, 128
    %178 = vxpose.xlu0.b32.cont [12/16] 0.0, 128
    %179 = vxpose.xlu0.b32.cont [13/16] 0.0, 128
    %180 = vxpose.xlu0.b32.cont [14/16] 0.0, 128
    %181 = vxpose.xlu0.b32.cont [15/16] 0.0, 128
    %182 = vxpose.xlu0.b32.end [16/16] 0.0, 128
    %v183 = vpop.trf.xlu0
    %v184 = vpop.trf.xlu0
    %v185 = vpop.trf.xlu0
    %v186 = vpop.trf.xlu0
    %v187 = vpop.trf.xlu0
    %v188 = vpop.trf.xlu0
    %v189 = vpop.trf.xlu0
    %v190 = vpop.trf.xlu0
    %v191 = vpop.trf.xlu0
    %v192 = vpop.trf.xlu0
    %v193 = vpop.trf.xlu0
    %v194 = vpop.trf.xlu0
    %v195 = vpop.trf.xlu0
    %v196 = vpop.trf.xlu0
    %v197 = vpop.trf.xlu0
    %v198 = vpop.trf.xlu0
    %199 = vxpose.xlu0.b32.start [1/16] %v33, 128
    %200 = vxpose.xlu0.b32.cont [2/16] %v34, 128
    %201 = vxpose.xlu0.b32.cont [3/16] 0.0, 128
    %202 = vxpose.xlu0.b32.cont [4/16] 0.0, 128
    %203 = vxpose.xlu0.b32.cont [5/16] 0.0, 128
    %204 = vxpose.xlu0.b32.cont [6/16] 0.0, 128
    %205 = vxpose.xlu0.b32.cont [7/16] 0.0, 128
    %206 = vxpose.xlu0.b32.cont [8/16] 0.0, 128
    %207 = vxpose.xlu0.b32.cont [9/16] 0.0, 128
    %208 = vxpose.xlu0.b32.cont [10/16] 0.0, 128
    %209 = vxpose.xlu0.b32.cont [11/16] 0.0, 128
    %210 = vxpose.xlu0.b32.cont [12/16] 0.0, 128
    %211 = vxpose.xlu0.b32.cont [13/16] 0.0, 128
    %212 = vxpose.xlu0.b32.cont [14/16] 0.0, 128
    %213 = vxpose.xlu0.b32.cont [15/16] 0.0, 128
    %214 = vxpose.xlu0.b32.end [16/16] 0.0, 128
    %v215 = vpop.trf.xlu0
    %v216 = vpop.trf.xlu0
    %v217 = vpop.trf.xlu0
    %v218 = vpop.trf.xlu0
    %v219 = vpop.trf.xlu0
    %v220 = vpop.trf.xlu0
    %v221 = vpop.trf.xlu0
    %v222 = vpop.trf.xlu0
    %v223 = vpop.trf.xlu0
    %v224 = vpop.trf.xlu0
    %v225 = vpop.trf.xlu0
    %v226 = vpop.trf.xlu0
    %v227 = vpop.trf.xlu0
    %v228 = vpop.trf.xlu0
    %v229 = vpop.trf.xlu0
    %v230 = vpop.trf.xlu0
    %231 = vxpose.xlu0.b32.start [1/16] %v35, 128
    %232 = vxpose.xlu0.b32.cont [2/16] %v36, 128
    %233 = vxpose.xlu0.b32.cont [3/16] 0.0, 128
    %234 = vxpose.xlu0.b32.cont [4/16] 0.0, 128
    %235 = vxpose.xlu0.b32.cont [5/16] 0.0, 128
    %236 = vxpose.xlu0.b32.cont [6/16] 0.0, 128
    %237 = vxpose.xlu0.b32.cont [7/16] 0.0, 128
    %238 = vxpose.xlu0.b32.cont [8/16] 0.0, 128
    %239 = vxpose.xlu0.b32.cont [9/16] 0.0, 128
    %240 = vxpose.xlu0.b32.cont [10/16] 0.0, 128
    %241 = vxpose.xlu0.b32.cont [11/16] 0.0, 128
    %242 = vxpose.xlu0.b32.cont [12/16] 0.0, 128
    %243 = vxpose.xlu0.b32.cont [13/16] 0.0, 128
    %244 = vxpose.xlu0.b32.cont [14/16] 0.0, 128
    %245 = vxpose.xlu0.b32.cont [15/16] 0.0, 128
    %246 = vxpose.xlu0.b32.end [16/16] 0.0, 128
    %v247 = vpop.trf.xlu0
    %v248 = vpop.trf.xlu0
    %v249 = vpop.trf.xlu0
    %v250 = vpop.trf.xlu0
    %v251 = vpop.trf.xlu0
    %v252 = vpop.trf.xlu0
    %v253 = vpop.trf.xlu0
    %v254 = vpop.trf.xlu0
    %v255 = vpop.trf.xlu0
    %v256 = vpop.trf.xlu0
    %v257 = vpop.trf.xlu0
    %v258 = vpop.trf.xlu0
    %v259 = vpop.trf.xlu0
    %v260 = vpop.trf.xlu0
    %v261 = vpop.trf.xlu0
    %v262 = vpop.trf.xlu0
    %263 = vxpose.xlu0.b32.start [1/16] %v37, 128
    %264 = vxpose.xlu0.b32.cont [2/16] %v38, 128
    %265 = vxpose.xlu0.b32.cont [3/16] 0.0, 128
    %266 = vxpose.xlu0.b32.cont [4/16] 0.0, 128
    %267 = vxpose.xlu0.b32.cont [5/16] 0.0, 128
    %268 = vxpose.xlu0.b32.cont [6/16] 0.0, 128
    %269 = vxpose.xlu0.b32.cont [7/16] 0.0, 128
    %270 = vxpose.xlu0.b32.cont [8/16] 0.0, 128
    %271 = vxpose.xlu0.b32.cont [9/16] 0.0, 128
    %272 = vxpose.xlu0.b32.cont [10/16] 0.0, 128
    %273 = vxpose.xlu0.b32.cont [11/16] 0.0, 128
    %274 = vxpose.xlu0.b32.cont [12/16] 0.0, 128
    %275 = vxpose.xlu0.b32.cont [13/16] 0.0, 128
    %276 = vxpose.xlu0.b32.cont [14/16] 0.0, 128
    %277 = vxpose.xlu0.b32.cont [15/16] 0.0, 128
    %278 = vxpose.xlu0.b32.end [16/16] 0.0, 128
    %v279 = vpop.trf.xlu0
    %v280 = vpop.trf.xlu0
    %v281 = vpop.trf.xlu0
    %v282 = vpop.trf.xlu0
    %v283 = vpop.trf.xlu0
    %v284 = vpop.trf.xlu0
    %v285 = vpop.trf.xlu0
    %v286 = vpop.trf.xlu0
    %v287 = vpop.trf.xlu0
    %v288 = vpop.trf.xlu0
    %v289 = vpop.trf.xlu0
    %v290 = vpop.trf.xlu0
    %v291 = vpop.trf.xlu0
    %v292 = vpop.trf.xlu0
    %v293 = vpop.trf.xlu0
    %v294 = vpop.trf.xlu0
    %vm295 = vcmask 130048
    %296 = vst.msk [vmem:[#allocation5] sm:$0xff] %vm295, %v55
    %297 = vst.msk [vmem:[#allocation5 + $0x8] sm:$0xff] %vm295, %v56
    %298 = vst.msk [vmem:[#allocation5 + $0x10] sm:$0xff] %vm295, %v87
    %299 = vst.msk [vmem:[#allocation5 + $0x18] sm:$0xff] %vm295, %v88
    %300 = vst.msk [vmem:[#allocation5 + $0x20] sm:$0xff] %vm295, %v119
    %301 = vst.msk [vmem:[#allocation5 + $0x28] sm:$0xff] %vm295, %v120
    %302 = vst.msk [vmem:[#allocation5 + $0x30] sm:$0xff] %vm295, %v151
    %303 = vst.msk [vmem:[#allocation5 + $0x38] sm:$0xff] %vm295, %v152
    %304 = vst.msk [vmem:[#allocation5 + $0x40] sm:$0xff] %vm295, %v183
    %305 = vst.msk [vmem:[#allocation5 + $0x48] sm:$0xff] %vm295, %v184
    %306 = vst.msk [vmem:[#allocation5 + $0x50] sm:$0xff] %vm295, %v215
    %307 = vst.msk [vmem:[#allocation5 + $0x58] sm:$0xff] %vm295, %v216
    %308 = vst.msk [vmem:[#allocation5 + $0x60] sm:$0xff] %vm295, %v247
    %309 = vst.msk [vmem:[#allocation5 + $0x68] sm:$0xff] %vm295, %v248
    %310 = vst.msk [vmem:[#allocation5 + $0x70] sm:$0xff] %vm295, %v279
    %311 = vst.msk [vmem:[#allocation5 + $0x78] sm:$0xff] %vm295, %v280
    // Predicated region
    $region10: #{tpu_custom_call.1} parent=1 // pred_check
      _
    $region11: #{tpu_custom_call.1} parent=1 // pred_check_branch
      %313 = sbr.rel (0) target = $region13
    $region12: #{tpu_custom_call.1} parent=1 // pred_region
      %s315 = ssub.s32 2048, 2048
      %316 = vsyncadd [#allocation4], %s315
      %s317 = sshll.u32 [#allocation5], 4
      %s318 = int_to_ptr.vmem [resolvable:$true] %s317
      %323 = dma.vmem_to_hbm [thread:$0]  %s318, 2048, %s1, [#allocation4], 128, 128, 8
    $region13: #{tpu_custom_call.1} parent=1 // pred_fallthru
      _
    // Predicated region
    $region14: #{tpu_custom_call.1} parent=1 // pred_check
      _
    $region15: #{tpu_custom_call.1} parent=1 // pred_check_branch
      %325 = sbr.rel (0) target = $region17
    $region16: #{tpu_custom_call.1} parent=1 // pred_region
      %326 = dma.done [#allocation4], 2048
    $region17: #{tpu_custom_call.1} parent=1 // pred_fallthru
      _
    %327 = vsyncpa [#allocation3], 1
    %328 = vsyncpa [#allocation4], 1

</llo_original>
